<compile_context>
chip_gen: v6e
topology: v6e:2x2x1
jax: 0.10.0
libtpu: 0.0.40
codegen_flags: <defaults>
</compile_context>

<pallas_src>
import functools

import jax
import jax.numpy as jnp
from jax import lax
from jax.experimental import pallas as pl
from jax.experimental.pallas import tpu as pltpu


# Transposed-RHS contraction (native MXU path): C[i, j] = sum_k A[i, k] * B[j, k]
_TRANS_RHS = (((1,), (1,)), ((), ()))


def bpnet_kernel(x_ref, wc_ref, bc_ref, bins_ref, ones_ref, o_ref):
    """One batch tile: x [TM, IN] -> o [1, 1, TM] (batch mapped to the lane axis)."""
    # Collapsed fc1..fc4 (no activations between layers in the reference model).
    s = jnp.dot(x_ref[...], wc_ref[...],
                preferred_element_type=jnp.float32) + bc_ref[...]        # [TM, OUT]

    # out = out - min(out, dim=1, keepdim=True)
    s = s - jnp.min(s, axis=1, keepdims=True)                            # [TM, OUT]

    # Fused row-sum + bins matmul as lane-dense transposed-RHS matvecs:
    #   num[0, i] = sum_k bins[k] * s[i, k]
    #   den[0, i] = sum_k            s[i, k]
    num = lax.dot_general(bins_ref[...], s, _TRANS_RHS,
                          preferred_element_type=jnp.float32)            # [1, TM]
    den = lax.dot_general(ones_ref[...], s, _TRANS_RHS,
                          preferred_element_type=jnp.float32)            # [1, TM]

    # (out / out_sum) @ bins == num / den ; reciprocal runs on the (idle) EUP.
    # NOTE: den == 0 when all logits of a row are equal -> inf/nan, same as the
    # PyTorch reference.
    o = num * pl.reciprocal(den, approx=True)                            # [1, TM]
    o_ref[...] = o[None, :, :]                                           # [1, 1, TM]


def _collapse_affine(params):
    """Collapse 4 bias-affine layers (no nonlinearity) into one affine map."""
    (w1, b1), (w2, b2), (w3, b3), (w4, b4) = params
    wc = w1 @ w2 @ w3 @ w4                                  # [in, out]
    bc = ((b1 @ w2 + b2) @ w3 + b3) @ w4 + b4               # [1, out]
    return wc, bc


@functools.partial(jax.jit, static_argnames=("input_dim", "tm"))
def bpnet_forward(x, params, bins, *, input_dim, tm=512):
    """BPNet forward. `tm` = batch-tile rows (multiple of 8); 512-2048 recommended
    so the double-buffered x tiles stay well inside scoped VMEM on v5e/v6e/v7x."""
    assert tm % 8 == 0, "tm must be a multiple of 8 (sublane tiling)"

    x2d = x.reshape(-1, input_dim).astype(jnp.float32)       # input.view(-1, input_dim)
    b_flat = x2d.shape[0]

    wc, bc = _collapse_affine(params)                        # [IN, OUT], [1, OUT]
    out_dim = wc.shape[1]
    bins_row = bins.reshape(1, out_dim).astype(jnp.float32)
    ones_row = jnp.ones((1, out_dim), jnp.float32)

    num_tiles = pl.cdiv(b_flat, tm)
    b_pad = num_tiles * tm
    if b_pad != b_flat:
        # Pad with zero rows; they produce finite garbage that is sliced off below.
        x2d = jnp.pad(x2d, ((0, b_pad - b_flat), (0, 0)))

    out_tiles = pl.pallas_call(
        bpnet_kernel,
        out_shape=jax.ShapeDtypeStruct((num_tiles, 1, tm), jnp.float32),
        grid=(num_tiles,),
        in_specs=[
            # Batch tile of x: auto double-buffered / pipelined across the grid.
            pl.BlockSpec((tm, input_dim), lambda i: (i, 0)),
            # Weights / bias / bins / ones: constant index map -> DMA'd once,
            # VMEM-resident across all batch tiles.
            pl.BlockSpec((input_dim, out_dim), lambda i: (0, 0)),
            pl.BlockSpec((1, out_dim), lambda i: (0, 0)),
            pl.BlockSpec((1, out_dim), lambda i: (0, 0)),
            pl.BlockSpec((1, out_dim), lambda i: (0, 0)),
        ],
        # Lane-dense output: one [1, TM] row per batch tile.
        out_specs=pl.BlockSpec((1, 1, tm), lambda i: (i, 0, 0)),
        compiler_params=pltpu.CompilerParams(
            dimension_semantics=("parallel",)),               # use both TCs on v7x
    )(x2d, wc, bc, bins_row, ones_row)

    out = out_tiles.reshape(-1)[:b_flat]
    # out.reshape(out.shape[0], -1, out.shape[-1]) -> [B_flat, 1, 1]
    return out.reshape(b_flat, 1, 1)


def make_bins(output_dim, tput_step):
    """Reproduces the __init__ bins construction."""
    idx = jnp.arange(output_dim, dtype=jnp.float32)
    bins = tput_step * (2.0 * idx + 1.0) / 2.0
    bins = bins.at[0].set(0.0)
    bins = bins.at[output_dim - 1].set(tput_step * (output_dim - 1))
    return bins.reshape(output_dim, 1)


def init_params(key, input_dim, hidden_dim, output_dim):
    """Deterministic synthetic weights, stored as [in, out] (pre-transposed)."""
    dims = [(input_dim, hidden_dim),
            (hidden_dim, hidden_dim),
            (hidden_dim, hidden_dim),
            (hidden_dim, output_dim)]
    params = []
    for (din, dout) in dims:
        key, kw, kb = jax.random.split(key, 3)
        bound = 1.0 / jnp.sqrt(din)
        w = jax.random.uniform(kw, (din, dout), jnp.float32, -bound, bound)
        b = jax.random.uniform(kb, (1, dout), jnp.float32, -bound, bound)
        params.append((w, b))
    return params


def bpnet_reference(x, params, bins, input_dim):
    """Pure-JAX layer-by-layer reference (mirrors the PyTorch forward)."""
    out = x.reshape(-1, input_dim).astype(jnp.float32)
    for (w, b) in params:
        out = out @ w + b
    out = out - jnp.min(out, axis=1, keepdims=True)
    out = out / jnp.sum(out, axis=1, keepdims=True)
    out = out @ bins
    return out.reshape(out.shape[0], -1, out.shape[-1])


if __name__ == "__main__":
    input_dim, hidden_dim, output_dim = 16, 32, 8
    tput_step = 2.0

    key = jax.random.PRNGKey(0)
    key, kx = jax.random.split(key)

    # (2, 4, 16, 16) -> view(-1, 16) gives 128 rows of width 16.
    x = jax.random.normal(kx, (2, 4, 16, 16), dtype=jnp.float32)

    params = init_params(key, input_dim, hidden_dim, output_dim)
    bins = make_bins(output_dim, tput_step)

    # tm=80 on purpose for the small demo: exercises a multi-step grid (2 tiles)
    # AND the pad-to-tile-multiple path (128 -> 160 rows). Production default: 512.
    out = bpnet_forward(x, params, bins, input_dim=input_dim, tm=80)
    jax.block_until_ready(out)

    assert out.shape == (128, 1, 1), out.shape

    ref = bpnet_reference(x, params, bins, input_dim)
    max_err = float(jnp.max(jnp.abs(out - ref)))
    # Tolerance covers the collapsed-weight rounding order + approx reciprocal.
    assert jnp.allclose(out, ref, rtol=2e-2, atol=2e-2), max_err

    print("KERNEL_OK")
</pallas_src>

<mosaic_0001>
module attributes {stable_mosaic.version = 11 : i64} {
  func.func @bpnet_kernel(%arg0: i32, %arg1: memref<80x16xf32, #tpu.memory_space<vmem>>, %arg2: memref<16x8xf32, #tpu.memory_space<vmem>>, %arg3: memref<1x8xf32, #tpu.memory_space<vmem>>, %arg4: memref<1x8xf32, #tpu.memory_space<vmem>>, %arg5: memref<1x8xf32, #tpu.memory_space<vmem>>, %arg6: memref<1x1x80xf32, #tpu.memory_space<vmem>>) attributes {dimension_semantics = [#tpu.dimension_semantics<parallel>], iteration_bounds = array<i64: 2>, scalar_prefetch = 0 : i64, scratch_operands = 0 : i64, tpu.core_type = #tpu.core_type<tc>, window_params = [{transform_indices = @transform_0, window_bounds = array<i64: 80, 16>}, {pipeline_mode = #tpu.pipeline_mode<synchronous>, transform_indices = @transform_1, window_bounds = array<i64: 16, 8>}, {pipeline_mode = #tpu.pipeline_mode<synchronous>, transform_indices = @transform_2, window_bounds = array<i64: 1, 8>}, {pipeline_mode = #tpu.pipeline_mode<synchronous>, transform_indices = @transform_3, window_bounds = array<i64: 1, 8>}, {pipeline_mode = #tpu.pipeline_mode<synchronous>, transform_indices = @transform_4, window_bounds = array<i64: 1, 8>}, {transform_indices = @transform_5, window_bounds = array<i64: 1, 1, 80>}]} {
    %c0 = arith.constant 0 : index
    %c0_0 = arith.constant 0 : index
    %0 = vector.load %arg1[%c0, %c0_0] : memref<80x16xf32, #tpu.memory_space<vmem>>, vector<80x16xf32>
    %c0_1 = arith.constant 0 : index
    %c0_2 = arith.constant 0 : index
    %1 = vector.load %arg2[%c0_1, %c0_2] : memref<16x8xf32, #tpu.memory_space<vmem>>, vector<16x8xf32>
    %cst = arith.constant dense<0.000000e+00> : vector<80x8xf32>
    %2 = tpu.matmul %0, %1, %cst {dimension_numbers = #tpu.dot_dimension_numbers<[1], [0], [0], [1], [0, 0, 1, 1], [], []>} : vector<80x16xf32>, vector<16x8xf32>, vector<80x8xf32> -> vector<80x8xf32>
    %c0_3 = arith.constant 0 : index
    %c0_4 = arith.constant 0 : index
    %3 = vector.load %arg3[%c0_3, %c0_4] : memref<1x8xf32, #tpu.memory_space<vmem>>, vector<1x8xf32>
    %4 = vector.broadcast %3 : vector<1x8xf32> to vector<80x8xf32>
    %5 = arith.addf %2, %4 : vector<80x8xf32>
    %cst_5 = arith.constant dense<0x7F800000> : vector<80xf32>
    %6 = vector.multi_reduction <minimumf>, %5, %cst_5 [1] : vector<80x8xf32> to vector<80xf32>
    %7 = vector.shape_cast %6 : vector<80xf32> to vector<80x1xf32>
    %8 = vector.broadcast %7 : vector<80x1xf32> to vector<80x8xf32>
    %9 = arith.subf %5, %8 : vector<80x8xf32>
    %c0_6 = arith.constant 0 : index
    %c0_7 = arith.constant 0 : index
    %10 = vector.load %arg4[%c0_6, %c0_7] : memref<1x8xf32, #tpu.memory_space<vmem>>, vector<1x8xf32>
    %cst_8 = arith.constant dense<0.000000e+00> : vector<1x80xf32>
    %11 = tpu.matmul %10, %9, %cst_8 {dimension_numbers = #tpu.dot_dimension_numbers<[1], [1], [0], [0], [0, 0, 1, 0], [], []>} : vector<1x8xf32>, vector<80x8xf32>, vector<1x80xf32> -> vector<1x80xf32>
    %c0_9 = arith.constant 0 : index
    %c0_10 = arith.constant 0 : index
    %12 = vector.load %arg5[%c0_9, %c0_10] : memref<1x8xf32, #tpu.memory_space<vmem>>, vector<1x8xf32>
    %cst_11 = arith.constant dense<0.000000e+00> : vector<1x80xf32>
    %13 = tpu.matmul %12, %9, %cst_11 {dimension_numbers = #tpu.dot_dimension_numbers<[1], [1], [0], [0], [0, 0, 1, 0], [], []>} : vector<1x8xf32>, vector<80x8xf32>, vector<1x80xf32> -> vector<1x80xf32>
    %14 = tpu.reciprocal %13 {approx = true} : vector<1x80xf32> -> vector<1x80xf32>
    %15 = arith.mulf %11, %14 : vector<1x80xf32>
    %16 = vector.shape_cast %15 : vector<1x80xf32> to vector<1x1x80xf32>
    %c0_12 = arith.constant 0 : index
    %c0_13 = arith.constant 0 : index
    %c0_14 = arith.constant 0 : index
    %17 = vector.load %arg6[%c0_12, %c0_13, %c0_14] : memref<1x1x80xf32, #tpu.memory_space<vmem>>, vector<1x1x80xf32>
    tpu.vector_store %arg6[%c0_12, %c0_13, %c0_14], %16 {strides = array<i32>} : memref<1x1x80xf32, #tpu.memory_space<vmem>>, vector<1x1x80xf32>,
    return
  }
  func.func @transform_0(%arg0: i32) -> (i32, i32) {
    %c0_i32 = arith.constant 0 : i32
    %c0_i32_0 = arith.constant 0 : i32
    return %arg0, %c0_i32 : i32, i32
  }
  func.func @transform_1(%arg0: i32) -> (i32, i32) {
    %c0_i32 = arith.constant 0 : i32
    %c0_i32_0 = arith.constant 0 : i32
    %c0_i32_1 = arith.constant 0 : i32
    return %c0_i32, %c0_i32_0 : i32, i32
  }
  func.func @transform_2(%arg0: i32) -> (i32, i32) {
    %c0_i32 = arith.constant 0 : i32
    %c0_i32_0 = arith.constant 0 : i32
    %c0_i32_1 = arith.constant 0 : i32
    return %c0_i32, %c0_i32_0 : i32, i32
  }
  func.func @transform_3(%arg0: i32) -> (i32, i32) {
    %c0_i32 = arith.constant 0 : i32
    %c0_i32_0 = arith.constant 0 : i32
    %c0_i32_1 = arith.constant 0 : i32
    return %c0_i32, %c0_i32_0 : i32, i32
  }
  func.func @transform_4(%arg0: i32) -> (i32, i32) {
    %c0_i32 = arith.constant 0 : i32
    %c0_i32_0 = arith.constant 0 : i32
    %c0_i32_1 = arith.constant 0 : i32
    return %c0_i32, %c0_i32_0 : i32, i32
  }
  func.func @transform_5(%arg0: i32) -> (i32, i32, i32) {
    %c0_i32 = arith.constant 0 : i32
    %c0_i32_0 = arith.constant 0 : i32
    %c0_i32_1 = arith.constant 0 : i32
    return %arg0, %c0_i32, %c0_i32_0 : i32, i32, i32
  }
}

</mosaic_0001>

<llo_original>
// kernel: bpnet_forward.1
$region0: #{bpnet_forward.1}
  #allocation0 [shape = 'u32[]', space=smem, size = 0x4, offset = 0x4, fixed_abs, tag = 'smem constant byte address 0x4 - core index']
  #allocation1 [shape = 'u32[144,128]{1,0:T(1,128)}', space=vmem, size = 0x12000, scoped, tag = 'internal scratch']
  %s0 = inlined_call_operand.vmem [shape: f32[160,16], index: 0, kind: input, shape index: {}]
  %s1 = inlined_call_operand.vmem [shape: f32[16,8], index: 1, kind: input, shape index: {}]
  %s2 = inlined_call_operand.vmem [shape: f32[1,8], index: 2, kind: input, shape index: {}]
  %s3 = inlined_call_operand.vmem [shape: f32[1,8], index: 3, kind: input, shape index: {}]
  %s4 = inlined_call_operand.vmem [shape: f32[1,8], index: 4, kind: input, shape index: {}]
  %s5 = inlined_call_operand.vmem [shape: f32[2,1,80], index: 5, kind: output, shape index: {}]
  %s6 = sld [smem:[#allocation0]]
  $region53: #{bpnet_forward.1} parent=0
    _
  %s8 = ssub.s32 1, %s6
  %s9 = scalar_select 0, %s8, %s6
  loop: start=0, step=1, limit=4
  $region2: #{bpnet_forward.1} parent=0 // loop_pre_header
    _
  $region3: #{bpnet_forward.1} parent=0 // loop_header
    %s11 = sphi 0, %s15
    %p12 = scmp.ge.s32.totalorder %s11, 4
    %s21 = sphi 0, %s23
    %s24 = sphi 0, %s21
    %s25 = sphi 0, %s24
    %s41 = sphi 0, %s25
    %s45 = sphi 0, %s45
    %s47 = sphi 0, %s45
    %s48 = sphi 0, %s47
    %s62 = sphi 0, %s48
    %s66 = sphi 0, %s66
    %s68 = sphi 0, %s66
    %s69 = sphi 0, %s68
    %s83 = sphi 0, %s69
    %s87 = sphi 0, %s87
    %s89 = sphi 0, %s87
    %s90 = sphi 0, %s89
    %s104 = sphi 0, %s90
    %s108 = sphi 0, %s108
    %s110 = sphi 0, %s108
    %s111 = sphi 0, %s110
    %s125 = sphi 0, %s111
    %s131 = sphi 0, %s133
    %s134 = sphi 0, %s131
    %s135 = sphi 0, %s134
    %s151 = sphi 0, %s135
  $region4: #{bpnet_forward.1} parent=0 // loop_header_branch
    %14 = sbr.rel (%p12) target = $region8
  $region5: #{bpnet_forward.1} parent=0 // loop_body
    %s16 = ssub.s32 %s11, 1
    %s17 = ssub.s32 %s11, 2
    %s18 = sadd.s32 %s11, 1
    %s19 = ssub.s32 %s11, %s18
    %p20 = scmp.eq.s32.totalorder %s19, 0
    %s22 = sadd.s32 %s21, 1
    %s23 = scalar_select %p20, %s21, %s22
    %p26 = pneg %p20
    %p27 = scmp.eq.s32.totalorder %s11, 1
    %p28 = por %p26, %p27
    %p29 = scmp.ne.s32.totalorder %s21, %s24
    %p30 = scmp.eq.s32.totalorder %s11, 0
    %p31 = por %p29, %p30
    %p32 = scmp.ne.s32.totalorder %s21, %s24
    %p33 = scmp.eq.s32.totalorder %s16, 1
    %p34 = por %p32, %p33
    %p35 = scmp.ne.s32.totalorder %s24, %s25
    %p36 = scmp.eq.s32.totalorder %s16, 0
    %p37 = por %p35, %p36
    %p38 = scmp.ne.s32.totalorder %s24, %s25
    %p39 = scmp.eq.s32.totalorder %s17, 1
    %p40 = por %p38, %p39
    %p42 = scmp.ne.s32.totalorder %s25, %s41
    %p43 = scmp.eq.s32.totalorder %s17, 0
    %p44 = por %p42, %p43
    %s46 = sadd.s32 %s45, 1
    %p49 = scmp.eq.s32.totalorder %s11, 1
    %p50 = scmp.ne.s32.totalorder %s45, %s47
    %p51 = scmp.eq.s32.totalorder %s11, 0
    %p52 = por %p50, %p51
    %p53 = scmp.ne.s32.totalorder %s45, %s47
    %p54 = scmp.eq.s32.totalorder %s16, 1
    %p55 = por %p53, %p54
    %p56 = scmp.ne.s32.totalorder %s47, %s48
    %p57 = scmp.eq.s32.totalorder %s16, 0
    %p58 = por %p56, %p57
    %p59 = scmp.ne.s32.totalorder %s47, %s48
    %p60 = scmp.eq.s32.totalorder %s17, 1
    %p61 = por %p59, %p60
    %p63 = scmp.ne.s32.totalorder %s48, %s62
    %p64 = scmp.eq.s32.totalorder %s17, 0
    %p65 = por %p63, %p64
    %s67 = sadd.s32 %s66, 1
    %p70 = scmp.eq.s32.totalorder %s11, 1
    %p71 = scmp.ne.s32.totalorder %s66, %s68
    %p72 = scmp.eq.s32.totalorder %s11, 0
    %p73 = por %p71, %p72
    %p74 = scmp.ne.s32.totalorder %s66, %s68
    %p75 = scmp.eq.s32.totalorder %s16, 1
    %p76 = por %p74, %p75
    %p77 = scmp.ne.s32.totalorder %s68, %s69
    %p78 = scmp.eq.s32.totalorder %s16, 0
    %p79 = por %p77, %p78
    %p80 = scmp.ne.s32.totalorder %s68, %s69
    %p81 = scmp.eq.s32.totalorder %s17, 1
    %p82 = por %p80, %p81
    %p84 = scmp.ne.s32.totalorder %s69, %s83
    %p85 = scmp.eq.s32.totalorder %s17, 0
    %p86 = por %p84, %p85
    %s88 = sadd.s32 %s87, 1
    %p91 = scmp.eq.s32.totalorder %s11, 1
    %p92 = scmp.ne.s32.totalorder %s87, %s89
    %p93 = scmp.eq.s32.totalorder %s11, 0
    %p94 = por %p92, %p93
    %p95 = scmp.ne.s32.totalorder %s87, %s89
    %p96 = scmp.eq.s32.totalorder %s16, 1
    %p97 = por %p95, %p96
    %p98 = scmp.ne.s32.totalorder %s89, %s90
    %p99 = scmp.eq.s32.totalorder %s16, 0
    %p100 = por %p98, %p99
    %p101 = scmp.ne.s32.totalorder %s89, %s90
    %p102 = scmp.eq.s32.totalorder %s17, 1
    %p103 = por %p101, %p102
    %p105 = scmp.ne.s32.totalorder %s90, %s104
    %p106 = scmp.eq.s32.totalorder %s17, 0
    %p107 = por %p105, %p106
    %s109 = sadd.s32 %s108, 1
    %p112 = scmp.eq.s32.totalorder %s11, 1
    %p113 = scmp.ne.s32.totalorder %s108, %s110
    %p114 = scmp.eq.s32.totalorder %s11, 0
    %p115 = por %p113, %p114
    %p116 = scmp.ne.s32.totalorder %s108, %s110
    %p117 = scmp.eq.s32.totalorder %s16, 1
    %p118 = por %p116, %p117
    %p119 = scmp.ne.s32.totalorder %s110, %s111
    %p120 = scmp.eq.s32.totalorder %s16, 0
    %p121 = por %p119, %p120
    %p122 = scmp.ne.s32.totalorder %s110, %s111
    %p123 = scmp.eq.s32.totalorder %s17, 1
    %p124 = por %p122, %p123
    %p126 = scmp.ne.s32.totalorder %s111, %s125
    %p127 = scmp.eq.s32.totalorder %s17, 0
    %p128 = por %p126, %p127
    %s129 = ssub.s32 %s11, %s18
    %p130 = scmp.eq.s32.totalorder %s129, 0
    %s132 = sadd.s32 %s131, 1
    %s133 = scalar_select %p130, %s131, %s132
    %p136 = pneg %p130
    %p137 = scmp.eq.s32.totalorder %s11, 1
    %p138 = por %p136, %p137
    %p139 = scmp.ne.s32.totalorder %s131, %s134
    %p140 = scmp.eq.s32.totalorder %s11, 0
    %p141 = por %p139, %p140
    %p142 = scmp.ne.s32.totalorder %s131, %s134
    %p143 = scmp.eq.s32.totalorder %s16, 1
    %p144 = por %p142, %p143
    %p145 = scmp.ne.s32.totalorder %s134, %s135
    %p146 = scmp.eq.s32.totalorder %s16, 0
    %p147 = por %p145, %p146
    %p148 = scmp.ne.s32.totalorder %s134, %s135
    %p149 = scmp.eq.s32.totalorder %s17, 1
    %p150 = por %p148, %p149
    %p152 = scmp.ne.s32.totalorder %s135, %s151
    %p153 = scmp.eq.s32.totalorder %s17, 0
    %p154 = por %p152, %p153
    %p155 = scmp.le.s32.totalorder 1, %s11
    %p156 = scmp.lt.s32.totalorder %s11, 3
    %p157 = pnand %p155, %p156
    %p158 = pneg %p157
    // Predicated region
    $region9: #{bpnet_forward.1} parent=5 // pred_check
      _
    $region10: #{bpnet_forward.1} parent=5 // pred_check_branch
      %160 = sbr.rel (%p157) target = $region12
    $region11: #{bpnet_forward.1} parent=5 // pred_region
      %s161 = ssub.s32 %s11, 1
      // Predicated region
      $region13: #{bpnet_forward.1} parent=11 // pred_check
        %p162 = pneg %p58
      $region14: #{bpnet_forward.1} parent=11 // pred_check_branch
        %164 = sbr.rel (%p162) target = $region16
      $region15: #{bpnet_forward.1} parent=11 // pred_region
        _
      $region16: #{bpnet_forward.1} parent=11 // pred_fallthru
        _
      // Predicated region
      $region17: #{bpnet_forward.1} parent=11 // pred_check
        %p165 = pneg %p79
      $region18: #{bpnet_forward.1} parent=11 // pred_check_branch
        %167 = sbr.rel (%p165) target = $region20
      $region19: #{bpnet_forward.1} parent=11 // pred_region
        _
      $region20: #{bpnet_forward.1} parent=11 // pred_fallthru
        _
      // Predicated region
      $region21: #{bpnet_forward.1} parent=11 // pred_check
        %p168 = pneg %p100
      $region22: #{bpnet_forward.1} parent=11 // pred_check_branch
        %170 = sbr.rel (%p168) target = $region24
      $region23: #{bpnet_forward.1} parent=11 // pred_region
        _
      $region24: #{bpnet_forward.1} parent=11 // pred_fallthru
        _
      // Predicated region
      $region25: #{bpnet_forward.1} parent=11 // pred_check
        %p171 = pneg %p121
      $region26: #{bpnet_forward.1} parent=11 // pred_check_branch
        %173 = sbr.rel (%p171) target = $region28
      $region27: #{bpnet_forward.1} parent=11 // pred_region
        _
      $region28: #{bpnet_forward.1} parent=11 // pred_fallthru
        _
    $region12: #{bpnet_forward.1} parent=5 // pred_fallthru
      _
    %p174 = scmp.lt.s32.totalorder %s11, 2
    // Predicated region
    $region29: #{bpnet_forward.1} parent=5 // pred_check
      %p175 = pneg %p174
    $region30: #{bpnet_forward.1} parent=5 // pred_check_branch
      %177 = sbr.rel (%p175) target = $region32
    $region31: #{bpnet_forward.1} parent=5 // pred_region
      // Predicated region
      $region33: #{bpnet_forward.1} parent=31 // pred_check
        %p178 = pneg %p31
      $region34: #{bpnet_forward.1} parent=31 // pred_check_branch
        %180 = sbr.rel (%p178) target = $region36
      $region35: #{bpnet_forward.1} parent=31 // pred_region
        %s181 = smul.u32 10, %s11
        %p182 = scmp.lt.s32.totalorder %s181, 19
        %s183 = scalar_select %p182, %s181, 19
        %s184 = smul.addr %s183, 8
        %s185 = scalar_lea.vmem %s0, %s184
        %s186 = smul.u32 10, %s11
      $region36: #{bpnet_forward.1} parent=31 // pred_fallthru
        _
    $region32: #{bpnet_forward.1} parent=5 // pred_fallthru
      _
    %p187 = scmp.le.s32.totalorder 1, %s11
    %p188 = scmp.lt.s32.totalorder %s11, 3
    %p189 = pnand %p187, %p188
    %p190 = pneg %p189
    // Predicated region
    $region37: #{bpnet_forward.1} parent=5 // pred_check
      _
    $region38: #{bpnet_forward.1} parent=5 // pred_check_branch
      %192 = sbr.rel (%p189) target = $region40
    $region39: #{bpnet_forward.1} parent=5 // pred_region
      %s193 = ssub.s32 %s11, 1
      %s194 = smul.u32 10, %s16
      %p195 = scmp.lt.s32.totalorder %s194, 19
      %s196 = scalar_select %p195, %s194, 19
      %s197 = smul.addr %s196, 8
      %s198 = scalar_lea.vmem %s0, %s197
      %p199 = pneg %p37
      %p200 = pneg %p34
      %p201 = pneg %p58
      %p202 = pneg %p55
      %p203 = pneg %p79
      %p204 = pneg %p76
      %p205 = pneg %p100
      %p206 = pneg %p97
      %p207 = pneg %p121
      %p208 = pneg %p118
      %p209 = pneg %p147
      %p210 = pneg %p144
      %p211 = scmp.lt.s32.totalorder %s16, 1
      %s212 = scalar_select %p211, %s16, 1
      %s213 = scalar_lea.vmem %s5, %s212
      %s214 = smul.u32 10, %s16
      %p215 = scmp.lt.s32.totalorder %s214, 19
      %s216 = scalar_select %p215, %s214, 19
      %s217 = smul.addr %s216, 8
      %s218 = scalar_lea.vmem %s0, %s217
      %s219 = smul.u32 10, %s16
      %p220 = scmp.lt.s32.totalorder %s16, 1
      %s221 = scalar_select %p220, %s16, 1
      %s222 = scalar_lea.vmem %s5, %s221
      %v223 = vld [vmem:[%s218] sm:$0xff]
      %v224 = vld [vmem:[%s218 + $0x8] sm:$0xff]
      %v225 = vld [vmem:[%s218 + $0x10] sm:$0xff]
      %v226 = vld [vmem:[%s218 + $0x18] sm:$0xff]
      %v227 = vld [vmem:[%s218 + $0x20] sm:$0xff]
      %v228 = vld [vmem:[%s218 + $0x28] sm:$0xff]
      %v229 = vld [vmem:[%s218 + $0x30] sm:$0xff]
      %v230 = vld [vmem:[%s218 + $0x38] sm:$0xff]
      %v231 = vld [vmem:[%s218 + $0x40] sm:$0xff]
      %v232 = vld [vmem:[%s218 + $0x48] sm:$0xff]
      %v233 = vld [vmem:[%s1] sm:$0xff]
      %v234 = vld [vmem:[%s1 + $0x8] sm:$0xff]
      %v235 = vld [vmem:[%s2] sm:$0x1]
      %v237 = vlaneseq
      %v238 = vshrl.u32 %v237, 7
      %v239 = vsub.s32 0, %v238
      %v240 = vrot.slane %v235, %v239
      %vm242 = vcmask 130048
      %v244 = vsel %vm242, %v223, 0
      %v247 = vsel %vm242, %v224, 0
      %v250 = vsel %vm242, %v225, 0
      %v253 = vsel %vm242, %v226, 0
      %v256 = vsel %vm242, %v227, 0
      %v259 = vsel %vm242, %v228, 0
      %v262 = vsel %vm242, %v229, 0
      %v265 = vsel %vm242, %v230, 0
      %v268 = vsel %vm242, %v231, 0
      %v271 = vsel %vm242, %v232, 0
      %273 = vmatprep.subr.mxu0 0.0
      %274 = vmatpush1.msra.mxu0 0.0
      %275 = vmatprep.subr.mxu0 0.0
      %276 = vmatpush1.msra.mxu0 0.0
      %277 = vmatprep.subr.mxu0 0.0
      %278 = vmatpush1.msra.mxu0 0.0
      %279 = vmatprep.subr.mxu0 0.0
      %280 = vmatpush1.msra.mxu0 0.0
      %281 = vmatprep.subr.mxu0 0.0
      %282 = vmatpush1.msra.mxu0 0.0
      %283 = vmatprep.subr.mxu0 0.0
      %284 = vmatpush1.msra.mxu0 0.0
      %285 = vmatprep.subr.mxu0 0.0
      %286 = vmatpush1.msra.mxu0 0.0
      %287 = vmatprep.subr.mxu0 0.0
      %288 = vmatpush1.msra.mxu0 0.0
      %289 = vmatprep.subr.mxu0 0.0
      %290 = vmatpush1.msra.mxu0 0.0
      %291 = vmatprep.subr.mxu0 0.0
      %292 = vmatpush1.msra.mxu0 0.0
      %293 = vmatprep.subr.mxu0 0.0
      %294 = vmatpush1.msra.mxu0 0.0
      %295 = vmatprep.subr.mxu0 0.0
      %296 = vmatpush1.msra.mxu0 0.0
      %297 = vmatprep.subr.mxu0 0.0
      %298 = vmatpush1.msra.mxu0 0.0
      %299 = vmatprep.subr.mxu0 0.0
      %300 = vmatpush1.msra.mxu0 0.0
      %301 = vmatprep.subr.mxu0 0.0
      %302 = vmatpush1.msra.mxu0 %v234
      %303 = vmatprep.subr.mxu0 0.0
      %304 = vmatpush1.msra.mxu0 %v233
      %305 = vmatprep.subr.mxu0 0.0
      %306 = vmatpush2.msra.mxu0 0.0
      %307 = vmatprep.subr.mxu0 0.0
      %308 = vmatpush2.msra.mxu0 0.0
      %309 = vmatprep.subr.mxu0 0.0
      %310 = vmatpush2.msra.mxu0 0.0
      %311 = vmatprep.subr.mxu0 0.0
      %312 = vmatpush2.msra.mxu0 0.0
      %313 = vmatprep.subr.mxu0 0.0
      %314 = vmatpush2.msra.mxu0 0.0
      %315 = vmatprep.subr.mxu0 0.0
      %316 = vmatpush2.msra.mxu0 0.0
      %317 = vmatprep.subr.mxu0 0.0
      %318 = vmatpush2.msra.mxu0 0.0
      %319 = vmatprep.subr.mxu0 0.0
      %320 = vmatpush2.msra.mxu0 0.0
      %321 = vmatprep.subr.mxu0 0.0
      %322 = vmatpush2.msra.mxu0 0.0
      %323 = vmatprep.subr.mxu0 0.0
      %324 = vmatpush2.msra.mxu0 0.0
      %325 = vmatprep.subr.mxu0 0.0
      %326 = vmatpush2.msra.mxu0 0.0
      %327 = vmatprep.subr.mxu0 0.0
      %328 = vmatpush2.msra.mxu0 0.0
      %329 = vmatprep.subr.mxu0 0.0
      %330 = vmatpush2.msra.mxu0 0.0
      %331 = vmatprep.subr.mxu0 0.0
      %332 = vmatpush2.msra.mxu0 0.0
      %333 = vmatprep.subr.mxu0 0.0
      %334 = vmatpush2.msra.mxu0 0.0
      %335 = vmatprep.subr.mxu0 0.0
      %336 = vmatpush2.msra.mxu0 0.0
      %337 = vmatprep.mubr.f32.mxu0 0.0
      %338 = vmatmul.mubr.f32.gmra.mxu0 %v244
      %v339 = vpop.f32.mrf.mxu0
      %v340 = vadd.f32 %v240, %v339
      %v341 = vpop.f32.mrf.mxu0
      %342 = vmatprep.mubr.f32.mxu0 0.0
      %343 = vmatmul.mubr.f32.gmra.mxu0 %v247
      %v344 = vpop.f32.mrf.mxu0
      %v345 = vadd.f32 %v240, %v344
      %v346 = vpop.f32.mrf.mxu0
      %347 = vmatprep.mubr.f32.mxu0 0.0
      %348 = vmatmul.mubr.f32.gmra.mxu0 %v250
      %v349 = vpop.f32.mrf.mxu0
      %v350 = vadd.f32 %v240, %v349
      %v351 = vpop.f32.mrf.mxu0
      %352 = vmatprep.mubr.f32.mxu0 0.0
      %353 = vmatmul.mubr.f32.gmra.mxu0 %v253
      %v354 = vpop.f32.mrf.mxu0
      %v355 = vadd.f32 %v240, %v354
      %v356 = vpop.f32.mrf.mxu0
      %357 = vmatprep.mubr.f32.mxu0 0.0
      %358 = vmatmul.mubr.f32.gmra.mxu0 %v256
      %v359 = vpop.f32.mrf.mxu0
      %v360 = vadd.f32 %v240, %v359
      %v361 = vpop.f32.mrf.mxu0
      %362 = vmatprep.mubr.f32.mxu0 0.0
      %363 = vmatmul.mubr.f32.gmra.mxu0 %v259
      %v364 = vpop.f32.mrf.mxu0
      %v365 = vadd.f32 %v240, %v364
      %v366 = vpop.f32.mrf.mxu0
      %367 = vmatprep.mubr.f32.mxu0 0.0
      %368 = vmatmul.mubr.f32.gmra.mxu0 %v262
      %v369 = vpop.f32.mrf.mxu0
      %v370 = vadd.f32 %v240, %v369
      %v371 = vpop.f32.mrf.mxu0
      %372 = vmatprep.mubr.f32.mxu0 0.0
      %373 = vmatmul.mubr.f32.gmra.mxu0 %v265
      %v374 = vpop.f32.mrf.mxu0
      %v375 = vadd.f32 %v240, %v374
      %v376 = vpop.f32.mrf.mxu0
      %377 = vmatprep.mubr.f32.mxu0 0.0
      %378 = vmatmul.mubr.f32.gmra.mxu0 %v268
      %v379 = vpop.f32.mrf.mxu0
      %v380 = vadd.f32 %v240, %v379
      %v381 = vpop.f32.mrf.mxu0
      %382 = vmatprep.mubr.f32.mxu0 0.0
      %383 = vmatmul.mubr.f32.gmra.mxu0 %v271
      %v384 = vpop.f32.mrf.mxu0
      %v385 = vadd.f32 %v240, %v384
      %v386 = vpop.f32.mrf.mxu0
      %387 = vdwg.mxu0
      %vm388 = vcmask 64512
      %v389 = vsel %vm388, %v340, inf
      %390 = vmin.xlane.f32.xlu0 %v389
      %v391 = vpop.xlane.xlu0 %390
      %v392 = vsel %vm388, %v345, inf
      %393 = vmin.xlane.f32.xlu0 %v392
      %v394 = vpop.xlane.xlu0 %393
      %v395 = vsel %vm388, %v350, inf
      %396 = vmin.xlane.f32.xlu0 %v395
      %v397 = vpop.xlane.xlu0 %396
      %v398 = vsel %vm388, %v355, inf
      %399 = vmin.xlane.f32.xlu0 %v398
      %v400 = vpop.xlane.xlu0 %399
      %v401 = vsel %vm388, %v360, inf
      %402 = vmin.xlane.f32.xlu0 %v401
      %v403 = vpop.xlane.xlu0 %402
      %v404 = vsel %vm388, %v365, inf
      %405 = vmin.xlane.f32.xlu0 %v404
      %v406 = vpop.xlane.xlu0 %405
      %v407 = vsel %vm388, %v370, inf
      %408 = vmin.xlane.f32.xlu0 %v407
      %v409 = vpop.xlane.xlu0 %408
      %v410 = vsel %vm388, %v375, inf
      %411 = vmin.xlane.f32.xlu0 %v410
      %v412 = vpop.xlane.xlu0 %411
      %v413 = vsel %vm388, %v380, inf
      %414 = vmin.xlane.f32.xlu0 %v413
      %v415 = vpop.xlane.xlu0 %414
      %v416 = vsel %vm388, %v385, inf
      %417 = vmin.xlane.f32.xlu0 %v416
      %v418 = vpop.xlane.xlu0 %417
      %v419 = vsub.f32 %v340, %v391
      %v420 = vsub.f32 %v345, %v394
      %v421 = vsub.f32 %v350, %v397
      %v422 = vsub.f32 %v355, %v400
      %v423 = vsub.f32 %v360, %v403
      %v424 = vsub.f32 %v365, %v406
      %v425 = vsub.f32 %v370, %v409
      %v426 = vsub.f32 %v375, %v412
      %v427 = vsub.f32 %v380, %v415
      %v428 = vsub.f32 %v385, %v418
      %v429 = vld [vmem:[%s3] sm:$0x1]
      %v431 = vsel %vm388, %v429, 0
      %v434 = vsel %vm388, %v419, 0
      %v437 = vsel %vm388, %v420, 0
      %v440 = vsel %vm388, %v421, 0
      %v443 = vsel %vm388, %v422, 0
      %v446 = vsel %vm388, %v423, 0
      %v449 = vsel %vm388, %v424, 0
      %v452 = vsel %vm388, %v425, 0
      %v455 = vsel %vm388, %v426, 0
      %v458 = vsel %vm388, %v427, 0
      %v461 = vsel %vm388, %v428, 0
      %463 = vmatprep.subr.mxu0 0.0
      %464 = vmatpush1.xpose.msra.mxu0 0.0
      %465 = vmatprep.subr.mxu0 0.0
      %466 = vmatpush1.xpose.msra.mxu0 0.0
      %467 = vmatprep.subr.mxu0 0.0
      %468 = vmatpush1.xpose.msra.mxu0 0.0
      %469 = vmatprep.subr.mxu0 0.0
      %470 = vmatpush1.xpose.msra.mxu0 0.0
      %471 = vmatprep.subr.mxu0 0.0
      %472 = vmatpush1.xpose.msra.mxu0 0.0
      %473 = vmatprep.subr.mxu0 0.0
      %474 = vmatpush1.xpose.msra.mxu0 0.0
      %475 = vmatprep.subr.mxu0 0.0
      %476 = vmatpush1.xpose.msra.mxu0 %v461
      %477 = vmatprep.subr.mxu0 0.0
      %478 = vmatpush1.xpose.msra.mxu0 %v458
      %479 = vmatprep.subr.mxu0 0.0
      %480 = vmatpush1.xpose.msra.mxu0 %v455
      %481 = vmatprep.subr.mxu0 0.0
      %482 = vmatpush1.xpose.msra.mxu0 %v452
      %483 = vmatprep.subr.mxu0 0.0
      %484 = vmatpush1.xpose.msra.mxu0 %v449
      %485 = vmatprep.subr.mxu0 0.0
      %486 = vmatpush1.xpose.msra.mxu0 %v446
      %487 = vmatprep.subr.mxu0 0.0
      %488 = vmatpush1.xpose.msra.mxu0 %v443
      %489 = vmatprep.subr.mxu0 0.0
      %490 = vmatpush1.xpose.msra.mxu0 %v440
      %491 = vmatprep.subr.mxu0 0.0
      %492 = vmatpush1.xpose.msra.mxu0 %v437
      %493 = vmatprep.subr.mxu0 0.0
      %494 = vmatpush1.xpose.msra.mxu0 %v434
      %495 = vmatprep.subr.mxu0 0.0
      %496 = vmatpush2.xpose.msra.mxu0 0.0
      %497 = vmatprep.subr.mxu0 0.0
      %498 = vmatpush2.xpose.msra.mxu0 0.0
      %499 = vmatprep.subr.mxu0 0.0
      %500 = vmatpush2.xpose.msra.mxu0 0.0
      %501 = vmatprep.subr.mxu0 0.0
      %502 = vmatpush2.xpose.msra.mxu0 0.0
      %503 = vmatprep.subr.mxu0 0.0
      %504 = vmatpush2.xpose.msra.mxu0 0.0
      %505 = vmatprep.subr.mxu0 0.0
      %506 = vmatpush2.xpose.msra.mxu0 0.0
      %507 = vmatprep.subr.mxu0 0.0
      %508 = vmatpush2.xpose.msra.mxu0 0.0
      %509 = vmatprep.subr.mxu0 0.0
      %510 = vmatpush2.xpose.msra.mxu0 0.0
      %511 = vmatprep.subr.mxu0 0.0
      %512 = vmatpush2.xpose.msra.mxu0 0.0
      %513 = vmatprep.subr.mxu0 0.0
      %514 = vmatpush2.xpose.msra.mxu0 0.0
      %515 = vmatprep.subr.mxu0 0.0
      %516 = vmatpush2.xpose.msra.mxu0 0.0
      %517 = vmatprep.subr.mxu0 0.0
      %518 = vmatpush2.xpose.msra.mxu0 0.0
      %519 = vmatprep.subr.mxu0 0.0
      %520 = vmatpush2.xpose.msra.mxu0 0.0
      %521 = vmatprep.subr.mxu0 0.0
      %522 = vmatpush2.xpose.msra.mxu0 0.0
      %523 = vmatprep.subr.mxu0 0.0
      %524 = vmatpush2.xpose.msra.mxu0 0.0
      %525 = vmatprep.subr.mxu0 0.0
      %526 = vmatpush2.xpose.msra.mxu0 0.0
      %527 = vmatprep.mubr.f32.mxu0 0.0
      %528 = vmatmul.mubr.f32.gmra.mxu0 %v431
      %v529 = vpop.f32.mrf.mxu0
      %v530 = vadd.f32 0.0, %v529
      %v531 = vpop.f32.mrf.mxu0
      %532 = vdwg.mxu0
      %v533 = vld [vmem:[%s4] sm:$0x1]
      %v535 = vsel %vm388, %v533, 0
      %537 = vmatprep.subr.mxu0 0.0
      %538 = vmatpush1.xpose.msra.mxu0 0.0
      %539 = vmatprep.subr.mxu0 0.0
      %540 = vmatpush1.xpose.msra.mxu0 0.0
      %541 = vmatprep.subr.mxu0 0.0
      %542 = vmatpush1.xpose.msra.mxu0 0.0
      %543 = vmatprep.subr.mxu0 0.0
      %544 = vmatpush1.xpose.msra.mxu0 0.0
      %545 = vmatprep.subr.mxu0 0.0
      %546 = vmatpush1.xpose.msra.mxu0 0.0
      %547 = vmatprep.subr.mxu0 0.0
      %548 = vmatpush1.xpose.msra.mxu0 0.0
      %549 = vmatprep.subr.mxu0 0.0
      %550 = vmatpush1.xpose.msra.mxu0 %v461
      %551 = vmatprep.subr.mxu0 0.0
      %552 = vmatpush1.xpose.msra.mxu0 %v458
      %553 = vmatprep.subr.mxu0 0.0
      %554 = vmatpush1.xpose.msra.mxu0 %v455
      %555 = vmatprep.subr.mxu0 0.0
      %556 = vmatpush1.xpose.msra.mxu0 %v452
      %557 = vmatprep.subr.mxu0 0.0
      %558 = vmatpush1.xpose.msra.mxu0 %v449
      %559 = vmatprep.subr.mxu0 0.0
      %560 = vmatpush1.xpose.msra.mxu0 %v446
      %561 = vmatprep.subr.mxu0 0.0
      %562 = vmatpush1.xpose.msra.mxu0 %v443
      %563 = vmatprep.subr.mxu0 0.0
      %564 = vmatpush1.xpose.msra.mxu0 %v440
      %565 = vmatprep.subr.mxu0 0.0
      %566 = vmatpush1.xpose.msra.mxu0 %v437
      %567 = vmatprep.subr.mxu0 0.0
      %568 = vmatpush1.xpose.msra.mxu0 %v434
      %569 = vmatprep.subr.mxu0 0.0
      %570 = vmatpush2.xpose.msra.mxu0 0.0
      %571 = vmatprep.subr.mxu0 0.0
      %572 = vmatpush2.xpose.msra.mxu0 0.0
      %573 = vmatprep.subr.mxu0 0.0
      %574 = vmatpush2.xpose.msra.mxu0 0.0
      %575 = vmatprep.subr.mxu0 0.0
      %576 = vmatpush2.xpose.msra.mxu0 0.0
      %577 = vmatprep.subr.mxu0 0.0
      %578 = vmatpush2.xpose.msra.mxu0 0.0
      %579 = vmatprep.subr.mxu0 0.0
      %580 = vmatpush2.xpose.msra.mxu0 0.0
      %581 = vmatprep.subr.mxu0 0.0
      %582 = vmatpush2.xpose.msra.mxu0 0.0
      %583 = vmatprep.subr.mxu0 0.0
      %584 = vmatpush2.xpose.msra.mxu0 0.0
      %585 = vmatprep.subr.mxu0 0.0
      %586 = vmatpush2.xpose.msra.mxu0 0.0
      %587 = vmatprep.subr.mxu0 0.0
      %588 = vmatpush2.xpose.msra.mxu0 0.0
      %589 = vmatprep.subr.mxu0 0.0
      %590 = vmatpush2.xpose.msra.mxu0 0.0
      %591 = vmatprep.subr.mxu0 0.0
      %592 = vmatpush2.xpose.msra.mxu0 0.0
      %593 = vmatprep.subr.mxu0 0.0
      %594 = vmatpush2.xpose.msra.mxu0 0.0
      %595 = vmatprep.subr.mxu0 0.0
      %596 = vmatpush2.xpose.msra.mxu0 0.0
      %597 = vmatprep.subr.mxu0 0.0
      %598 = vmatpush2.xpose.msra.mxu0 0.0
      %599 = vmatprep.subr.mxu0 0.0
      %600 = vmatpush2.xpose.msra.mxu0 0.0
      %601 = vmatprep.mubr.f32.mxu0 0.0
      %602 = vmatmul.mubr.f32.gmra.mxu0 %v535
      %v603 = vpop.f32.mrf.mxu0
      %v604 = vadd.f32 0.0, %v603
      %v605 = vpop.f32.mrf.mxu0
      %606 = vdwg.mxu0
      %v607 = vrcp.pop %v604
      %v608 = vmul.f32 %v530, %v607
      %vm609 = vcmask 647168
      %610 = vst.msk [vmem:[%s222] sm:$0x1] %vm609, %v608
      %p611 = scmp.lt.s32.totalorder %s16, 1
      %s612 = scalar_select %p611, %s16, 1
      %s613 = scalar_lea.vmem %s5, %s612
      // Predicated region
      $region41: #{bpnet_forward.1} parent=39 // pred_check
        %p614 = pneg %p144
      $region42: #{bpnet_forward.1} parent=39 // pred_check_branch
        %616 = sbr.rel (%p614) target = $region44
      $region43: #{bpnet_forward.1} parent=39 // pred_region
        _
      $region44: #{bpnet_forward.1} parent=39 // pred_fallthru
        _
    $region40: #{bpnet_forward.1} parent=5 // pred_fallthru
      _
    %p617 = scmp.le.s32.totalorder 2, %s11
    // Predicated region
    $region45: #{bpnet_forward.1} parent=5 // pred_check
      %p618 = pneg %p617
    $region46: #{bpnet_forward.1} parent=5 // pred_check_branch
      %620 = sbr.rel (%p618) target = $region48
    $region47: #{bpnet_forward.1} parent=5 // pred_region
      %s621 = ssub.s32 %s11, 2
      // Predicated region
      $region49: #{bpnet_forward.1} parent=47 // pred_check
        %p622 = pneg %p150
      $region50: #{bpnet_forward.1} parent=47 // pred_check_branch
        %624 = sbr.rel (%p622) target = $region52
      $region51: #{bpnet_forward.1} parent=47 // pred_region
        %p625 = scmp.lt.s32.totalorder %s17, 1
        %s626 = scalar_select %p625, %s17, 1
        %s627 = scalar_lea.vmem %s5, %s626
      $region52: #{bpnet_forward.1} parent=47 // pred_fallthru
        _
    $region48: #{bpnet_forward.1} parent=5 // pred_fallthru
      _
  $region6: #{bpnet_forward.1} parent=0 // loop_footer
    %s15 = sadd.s32 1, %s11
  $region7: #{bpnet_forward.1} parent=0 // loop_footer_branch
    %10 = sbr.rel target = $region3
  $region8: #{bpnet_forward.1} parent=0 // loop_exit
    _

</llo_original>
